<compile_context>
chip_gen: v5e
topology: v5e:2x2
jax: 0.10.0
libtpu: 0.0.40
codegen_flags: <defaults>
</compile_context>

<pallas_src>
import math
import functools

import jax
import jax.numpy as jnp
import numpy as np
from jax.experimental import pallas as pl
from jax.experimental.pallas import tpu as pltpu


def _embedding_gather_kernel(ids_ref, lut_hbm, o_ref, sems, *,
                             scale, tm, nsem):
    # ids_ref : (n_pad,)  int32 in SMEM (scalar prefetch)
    # lut_hbm : (V, D)    table resident in HBM (memory_space=pl.ANY)
    # o_ref   : (tm, D)   output block in VMEM (also the DMA-gather target)
    # sems    : (nsem,)   DMA semaphores; sem s receives rows {s, s+nsem, ...}
    rows_per_sem = tm // nsem
    base = pl.program_id(0) * tm

    # ---- Issue phase: nsem descriptors per outer iteration (static inner
    # unroll => dense back-to-back descriptor issue, static sem indices).
    @pl.loop(0, rows_per_sem)
    def _issue(g):
        t0 = g * nsem
        for s in range(nsem):                      # static Python unroll
            t = t0 + s
            tok = ids_ref[base + t]
            pltpu.make_async_copy(
                lut_hbm.at[pl.ds(tok, 1)],         # (1, D) row in HBM
                o_ref.at[pl.ds(t, 1)],             # (1, D) row of output block
                sems.at[s],
            ).start()

    # ---- Batched wait phase: one wait per semaphore. Each wait descriptor
    # covers (rows_per_sem, D) rows, so its byte count equals the sum of the
    # rows_per_sem identically sized row copies signaled on that semaphore.
    # NOTE: all waits complete before any read of o_ref below; do not
    # interleave per-row compute with these shared-semaphore waits.
    for s in range(nsem):                          # static Python loop (nsem)
        pltpu.make_async_copy(
            lut_hbm.at[pl.ds(0, rows_per_sem)],
            o_ref.at[pl.ds(0, rows_per_sem)],
            sems.at[s],
        ).wait()

    # ---- Scale in place (every row of the block was written by the DMAs).
    o_ref[...] = (o_ref[...] * scale).astype(o_ref.dtype)


def embeddings_forward(x, lut, *, tm=512, nsem=8):
    """x: (B, S) integer token ids; lut: (vocab, d_model).
    Returns (B, S, d_model) == lut[x] * sqrt(d_model)."""
    b, s = x.shape
    vocab, d_model = lut.shape
    assert d_model % 128 == 0, (
        "d_model must be a multiple of 128 for lane-dense stores; "
        "pad the embedding table outside the kernel otherwise")

    itemsize = jnp.dtype(lut.dtype).itemsize
    n = b * s

    # Per-generation-safe tile sizing: keep one (tm, D) output block <= ~8 MiB
    # so the double-buffered output stays well under v5e's 16 MiB scoped
    # default and far under v7x's 64 MiB physical VMEM.
    vmem_block_budget = 8 * 1024 * 1024
    tm_vmem = max(8, (vmem_block_budget // (2 * d_model * itemsize)) // 8 * 8)
    tm = min(tm, tm_vmem)
    # Don't gather more padded rows than necessary for small inputs.
    tm = min(tm, -(-n // 8) * 8)
    tm = max(8, (tm // 8) * 8)
    nsem = min(nsem, tm)            # tm is a multiple of 8 and nsem <= 8,
    assert tm % nsem == 0           # so nsem always divides tm.
    assert vocab >= tm // nsem, "vocab too small for batched-wait descriptor"

    n_pad = -(-n // tm) * tm        # round token count up to a multiple of tm

    # Clamp OOB ids (nn.Embedding would error; we stay DMA-safe) and pad the
    # tail with a valid id (row 0) -- padded rows are sliced off below.
    ids = jnp.clip(x.reshape(-1).astype(jnp.int32), 0, vocab - 1)
    if n_pad != n:
        ids = jnp.concatenate([ids, jnp.zeros((n_pad - n,), dtype=jnp.int32)])

    scale = math.sqrt(d_model)
    kernel = functools.partial(_embedding_gather_kernel,
                               scale=scale, tm=tm, nsem=nsem)

    cost = pl.CostEstimate(
        flops=n_pad * d_model,                       # the scale multiply
        transcendentals=0,
        bytes_accessed=2 * n_pad * d_model * itemsize + n_pad * 4,
    )

    out_flat = pl.pallas_call(
        kernel,
        out_shape=jax.ShapeDtypeStruct((n_pad, d_model), lut.dtype),
        grid_spec=pltpu.PrefetchScalarGridSpec(
            num_scalar_prefetch=1,                   # ids -> SMEM
            grid=(n_pad // tm,),
            in_specs=[
                # Embedding table stays in HBM; rows are gathered manually.
                pl.BlockSpec(memory_space=pl.ANY),
            ],
            out_specs=pl.BlockSpec((tm, d_model), lambda i, ids: (i, 0)),
            scratch_shapes=[
                pltpu.SemaphoreType.DMA((nsem,)),
            ],
        ),
        compiler_params=pltpu.CompilerParams(
            # Tiles are independent (no accumulator): shard across both
            # TensorCores on v7x; harmless on v5e/v6e.
            dimension_semantics=("parallel",),
            vmem_limit_bytes=32 * 1024 * 1024,
        ),
        cost_estimate=cost,
    )(ids, lut)

    return out_flat[:n].reshape(b, s, d_model)


if __name__ == "__main__":
    # Small shapes consistent with Embeddings(d_model, vocab).
    d_model = 128
    vocab = 1024
    batch, seq = 2, 8

    key = jax.random.PRNGKey(0)
    k_lut, k_ids = jax.random.split(key)
    # nn.Embedding default init ~ N(0, 1)
    lut = jax.random.normal(k_lut, (vocab, d_model), dtype=jnp.float32)
    x = jax.random.randint(k_ids, (batch, seq), 0, vocab, dtype=jnp.int32)

    out = embeddings_forward(x, lut)
    out = jax.block_until_ready(out)

    # Reference (plain JAX) for correctness check.
    ref = jnp.take(lut, x, axis=0) * math.sqrt(d_model)
    assert out.shape == (batch, seq, d_model)
    assert out.dtype == jnp.float32
    np.testing.assert_allclose(np.asarray(out), np.asarray(ref),
                               rtol=1e-6, atol=1e-6)
    print("KERNEL_OK")
</pallas_src>

<mosaic_0001>
module attributes {stable_mosaic.version = 11 : i64} {
  func.func @_embedding_gather_kernel(%arg0: i32, %arg1: memref<16xi32, #tpu.memory_space<smem>>, %arg2: memref<1024x128xf32, #tpu.memory_space<any>>, %arg3: memref<16x128xf32, #tpu.memory_space<vmem>>, %arg4: memref<8x!tpu.dma_semaphore, #tpu.memory_space<semaphore_mem>>) attributes {dimension_semantics = [#tpu.dimension_semantics<parallel>], iteration_bounds = array<i64: 1>, scalar_prefetch = 1 : i64, scratch_operands = 1 : i64, tpu.core_type = #tpu.core_type<tc>, window_params = [{}, {transform_indices = @transform_1, window_bounds = array<i64: 16, 128>}]} {
    %c16_i32 = arith.constant 16 : i32
    %0 = arith.muli %arg0, %c16_i32 : i32
    %c0_i32 = arith.constant 0 : i32
    %c2_i32 = arith.constant 2 : i32
    %1 = arith.addi %c0_i32, %c2_i32 : i32
    %c1_i32 = arith.constant 1 : i32
    scf.for %arg5 = %c0_i32 to %1 step %c1_i32  : i32 {
      %c1_i32_39 = arith.constant 1 : i32
      %38 = arith.muli %arg5, %c1_i32_39 : i32
      %c0_i32_40 = arith.constant 0 : i32
      %39 = arith.addi %c0_i32_40, %38 : i32
      %c8_i32 = arith.constant 8 : i32
      %40 = arith.muli %39, %c8_i32 : i32
      %c0_i32_41 = arith.constant 0 : i32
      %41 = arith.addi %40, %c0_i32_41 : i32
      %42 = arith.addi %0, %41 : i32
      %43 = arith.index_cast %42 : i32 to index
      %44 = memref.load %arg1[%43] : memref<16xi32, #tpu.memory_space<smem>>
      %c0_i32_42 = arith.constant 0 : i32
      %c0_i32_43 = arith.constant 0 : i32
      %45 = tpu.memref_slice %arg2[%44, %c0_i32_43] : memref<1024x128xf32, #tpu.memory_space<any>> -> memref<1x128xf32, #tpu.memory_space<any>>
      %c0_i32_44 = arith.constant 0 : i32
      %46 = tpu.memref_slice %arg3[%41, %c0_i32_44] : memref<16x128xf32, #tpu.memory_space<vmem>> -> memref<1x128xf32, #tpu.memory_space<vmem>>
      %47 = tpu.memref_slice %arg4[%c0_i32_42] : memref<8x!tpu.dma_semaphore, #tpu.memory_space<semaphore_mem>> -> memref<1x!tpu.dma_semaphore, #tpu.memory_space<semaphore_mem>>
      %48 = tpu.memref_squeeze %47 : memref<1x!tpu.dma_semaphore, #tpu.memory_space<semaphore_mem>> -> memref<!tpu.dma_semaphore, #tpu.memory_space<semaphore_mem>>
      tpu.enqueue_dma source(%45 : memref<1x128xf32, #tpu.memory_space<any>>) target(%46 : memref<1x128xf32, #tpu.memory_space<vmem>>) target_semaphore(%48 : memref<!tpu.dma_semaphore, #tpu.memory_space<semaphore_mem>>)
      %c1_i32_45 = arith.constant 1 : i32
      %49 = arith.addi %40, %c1_i32_45 : i32
      %50 = arith.addi %0, %49 : i32
      %51 = arith.index_cast %50 : i32 to index
      %52 = memref.load %arg1[%51] : memref<16xi32, #tpu.memory_space<smem>>
      %c1_i32_46 = arith.constant 1 : i32
      %c0_i32_47 = arith.constant 0 : i32
      %53 = tpu.memref_slice %arg2[%52, %c0_i32_47] : memref<1024x128xf32, #tpu.memory_space<any>> -> memref<1x128xf32, #tpu.memory_space<any>>
      %c0_i32_48 = arith.constant 0 : i32
      %54 = tpu.memref_slice %arg3[%49, %c0_i32_48] : memref<16x128xf32, #tpu.memory_space<vmem>> -> memref<1x128xf32, #tpu.memory_space<vmem>>
      %55 = tpu.memref_slice %arg4[%c1_i32_46] : memref<8x!tpu.dma_semaphore, #tpu.memory_space<semaphore_mem>> -> memref<1x!tpu.dma_semaphore, #tpu.memory_space<semaphore_mem>>
      %56 = tpu.memref_squeeze %55 : memref<1x!tpu.dma_semaphore, #tpu.memory_space<semaphore_mem>> -> memref<!tpu.dma_semaphore, #tpu.memory_space<semaphore_mem>>
      tpu.enqueue_dma source(%53 : memref<1x128xf32, #tpu.memory_space<any>>) target(%54 : memref<1x128xf32, #tpu.memory_space<vmem>>) target_semaphore(%56 : memref<!tpu.dma_semaphore, #tpu.memory_space<semaphore_mem>>)
      %c2_i32_49 = arith.constant 2 : i32
      %57 = arith.addi %40, %c2_i32_49 : i32
      %58 = arith.addi %0, %57 : i32
      %59 = arith.index_cast %58 : i32 to index
      %60 = memref.load %arg1[%59] : memref<16xi32, #tpu.memory_space<smem>>
      %c2_i32_50 = arith.constant 2 : i32
      %c0_i32_51 = arith.constant 0 : i32
      %61 = tpu.memref_slice %arg2[%60, %c0_i32_51] : memref<1024x128xf32, #tpu.memory_space<any>> -> memref<1x128xf32, #tpu.memory_space<any>>
      %c0_i32_52 = arith.constant 0 : i32
      %62 = tpu.memref_slice %arg3[%57, %c0_i32_52] : memref<16x128xf32, #tpu.memory_space<vmem>> -> memref<1x128xf32, #tpu.memory_space<vmem>>
      %63 = tpu.memref_slice %arg4[%c2_i32_50] : memref<8x!tpu.dma_semaphore, #tpu.memory_space<semaphore_mem>> -> memref<1x!tpu.dma_semaphore, #tpu.memory_space<semaphore_mem>>
      %64 = tpu.memref_squeeze %63 : memref<1x!tpu.dma_semaphore, #tpu.memory_space<semaphore_mem>> -> memref<!tpu.dma_semaphore, #tpu.memory_space<semaphore_mem>>
      tpu.enqueue_dma source(%61 : memref<1x128xf32, #tpu.memory_space<any>>) target(%62 : memref<1x128xf32, #tpu.memory_space<vmem>>) target_semaphore(%64 : memref<!tpu.dma_semaphore, #tpu.memory_space<semaphore_mem>>)
      %c3_i32_53 = arith.constant 3 : i32
      %65 = arith.addi %40, %c3_i32_53 : i32
      %66 = arith.addi %0, %65 : i32
      %67 = arith.index_cast %66 : i32 to index
      %68 = memref.load %arg1[%67] : memref<16xi32, #tpu.memory_space<smem>>
      %c3_i32_54 = arith.constant 3 : i32
      %c0_i32_55 = arith.constant 0 : i32
      %69 = tpu.memref_slice %arg2[%68, %c0_i32_55] : memref<1024x128xf32, #tpu.memory_space<any>> -> memref<1x128xf32, #tpu.memory_space<any>>
      %c0_i32_56 = arith.constant 0 : i32
      %70 = tpu.memref_slice %arg3[%65, %c0_i32_56] : memref<16x128xf32, #tpu.memory_space<vmem>> -> memref<1x128xf32, #tpu.memory_space<vmem>>
      %71 = tpu.memref_slice %arg4[%c3_i32_54] : memref<8x!tpu.dma_semaphore, #tpu.memory_space<semaphore_mem>> -> memref<1x!tpu.dma_semaphore, #tpu.memory_space<semaphore_mem>>
      %72 = tpu.memref_squeeze %71 : memref<1x!tpu.dma_semaphore, #tpu.memory_space<semaphore_mem>> -> memref<!tpu.dma_semaphore, #tpu.memory_space<semaphore_mem>>
      tpu.enqueue_dma source(%69 : memref<1x128xf32, #tpu.memory_space<any>>) target(%70 : memref<1x128xf32, #tpu.memory_space<vmem>>) target_semaphore(%72 : memref<!tpu.dma_semaphore, #tpu.memory_space<semaphore_mem>>)
      %c4_i32_57 = arith.constant 4 : i32
      %73 = arith.addi %40, %c4_i32_57 : i32
      %74 = arith.addi %0, %73 : i32
      %75 = arith.index_cast %74 : i32 to index
      %76 = memref.load %arg1[%75] : memref<16xi32, #tpu.memory_space<smem>>
      %c4_i32_58 = arith.constant 4 : i32
      %c0_i32_59 = arith.constant 0 : i32
      %77 = tpu.memref_slice %arg2[%76, %c0_i32_59] : memref<1024x128xf32, #tpu.memory_space<any>> -> memref<1x128xf32, #tpu.memory_space<any>>
      %c0_i32_60 = arith.constant 0 : i32
      %78 = tpu.memref_slice %arg3[%73, %c0_i32_60] : memref<16x128xf32, #tpu.memory_space<vmem>> -> memref<1x128xf32, #tpu.memory_space<vmem>>
      %79 = tpu.memref_slice %arg4[%c4_i32_58] : memref<8x!tpu.dma_semaphore, #tpu.memory_space<semaphore_mem>> -> memref<1x!tpu.dma_semaphore, #tpu.memory_space<semaphore_mem>>
      %80 = tpu.memref_squeeze %79 : memref<1x!tpu.dma_semaphore, #tpu.memory_space<semaphore_mem>> -> memref<!tpu.dma_semaphore, #tpu.memory_space<semaphore_mem>>
      tpu.enqueue_dma source(%77 : memref<1x128xf32, #tpu.memory_space<any>>) target(%78 : memref<1x128xf32, #tpu.memory_space<vmem>>) target_semaphore(%80 : memref<!tpu.dma_semaphore, #tpu.memory_space<semaphore_mem>>)
      %c5_i32_61 = arith.constant 5 : i32
      %81 = arith.addi %40, %c5_i32_61 : i32
      %82 = arith.addi %0, %81 : i32
      %83 = arith.index_cast %82 : i32 to index
      %84 = memref.load %arg1[%83] : memref<16xi32, #tpu.memory_space<smem>>
      %c5_i32_62 = arith.constant 5 : i32
      %c0_i32_63 = arith.constant 0 : i32
      %85 = tpu.memref_slice %arg2[%84, %c0_i32_63] : memref<1024x128xf32, #tpu.memory_space<any>> -> memref<1x128xf32, #tpu.memory_space<any>>
      %c0_i32_64 = arith.constant 0 : i32
      %86 = tpu.memref_slice %arg3[%81, %c0_i32_64] : memref<16x128xf32, #tpu.memory_space<vmem>> -> memref<1x128xf32, #tpu.memory_space<vmem>>
      %87 = tpu.memref_slice %arg4[%c5_i32_62] : memref<8x!tpu.dma_semaphore, #tpu.memory_space<semaphore_mem>> -> memref<1x!tpu.dma_semaphore, #tpu.memory_space<semaphore_mem>>
      %88 = tpu.memref_squeeze %87 : memref<1x!tpu.dma_semaphore, #tpu.memory_space<semaphore_mem>> -> memref<!tpu.dma_semaphore, #tpu.memory_space<semaphore_mem>>
      tpu.enqueue_dma source(%85 : memref<1x128xf32, #tpu.memory_space<any>>) target(%86 : memref<1x128xf32, #tpu.memory_space<vmem>>) target_semaphore(%88 : memref<!tpu.dma_semaphore, #tpu.memory_space<semaphore_mem>>)
      %c6_i32_65 = arith.constant 6 : i32
      %89 = arith.addi %40, %c6_i32_65 : i32
      %90 = arith.addi %0, %89 : i32
      %91 = arith.index_cast %90 : i32 to index
      %92 = memref.load %arg1[%91] : memref<16xi32, #tpu.memory_space<smem>>
      %c6_i32_66 = arith.constant 6 : i32
      %c0_i32_67 = arith.constant 0 : i32
      %93 = tpu.memref_slice %arg2[%92, %c0_i32_67] : memref<1024x128xf32, #tpu.memory_space<any>> -> memref<1x128xf32, #tpu.memory_space<any>>
      %c0_i32_68 = arith.constant 0 : i32
      %94 = tpu.memref_slice %arg3[%89, %c0_i32_68] : memref<16x128xf32, #tpu.memory_space<vmem>> -> memref<1x128xf32, #tpu.memory_space<vmem>>
      %95 = tpu.memref_slice %arg4[%c6_i32_66] : memref<8x!tpu.dma_semaphore, #tpu.memory_space<semaphore_mem>> -> memref<1x!tpu.dma_semaphore, #tpu.memory_space<semaphore_mem>>
      %96 = tpu.memref_squeeze %95 : memref<1x!tpu.dma_semaphore, #tpu.memory_space<semaphore_mem>> -> memref<!tpu.dma_semaphore, #tpu.memory_space<semaphore_mem>>
      tpu.enqueue_dma source(%93 : memref<1x128xf32, #tpu.memory_space<any>>) target(%94 : memref<1x128xf32, #tpu.memory_space<vmem>>) target_semaphore(%96 : memref<!tpu.dma_semaphore, #tpu.memory_space<semaphore_mem>>)
      %c7_i32_69 = arith.constant 7 : i32
      %97 = arith.addi %40, %c7_i32_69 : i32
      %98 = arith.addi %0, %97 : i32
      %99 = arith.index_cast %98 : i32 to index
      %100 = memref.load %arg1[%99] : memref<16xi32, #tpu.memory_space<smem>>
      %c7_i32_70 = arith.constant 7 : i32
      %c0_i32_71 = arith.constant 0 : i32
      %101 = tpu.memref_slice %arg2[%100, %c0_i32_71] : memref<1024x128xf32, #tpu.memory_space<any>> -> memref<1x128xf32, #tpu.memory_space<any>>
      %c0_i32_72 = arith.constant 0 : i32
      %102 = tpu.memref_slice %arg3[%97, %c0_i32_72] : memref<16x128xf32, #tpu.memory_space<vmem>> -> memref<1x128xf32, #tpu.memory_space<vmem>>
      %103 = tpu.memref_slice %arg4[%c7_i32_70] : memref<8x!tpu.dma_semaphore, #tpu.memory_space<semaphore_mem>> -> memref<1x!tpu.dma_semaphore, #tpu.memory_space<semaphore_mem>>
      %104 = tpu.memref_squeeze %103 : memref<1x!tpu.dma_semaphore, #tpu.memory_space<semaphore_mem>> -> memref<!tpu.dma_semaphore, #tpu.memory_space<semaphore_mem>>
      tpu.enqueue_dma source(%101 : memref<1x128xf32, #tpu.memory_space<any>>) target(%102 : memref<1x128xf32, #tpu.memory_space<vmem>>) target_semaphore(%104 : memref<!tpu.dma_semaphore, #tpu.memory_space<semaphore_mem>>)
    }
    %c2_i32_0 = arith.constant 2 : i32
    %c0_i32_1 = arith.constant 0 : i32
    %c0_i32_2 = arith.constant 0 : i32
    %c0_i32_3 = arith.constant 0 : i32
    %2 = tpu.memref_slice %arg2[%c0_i32_2, %c0_i32_3] : memref<1024x128xf32, #tpu.memory_space<any>> -> memref<2x128xf32, #tpu.memory_space<any>>
    %c0_i32_4 = arith.constant 0 : i32
    %c0_i32_5 = arith.constant 0 : i32
    %3 = tpu.memref_slice %arg3[%c0_i32_4, %c0_i32_5] : memref<16x128xf32, #tpu.memory_space<vmem>> -> memref<2x128xf32, #tpu.memory_space<vmem>>
    %4 = tpu.memref_slice %arg4[%c0_i32_1] : memref<8x!tpu.dma_semaphore, #tpu.memory_space<semaphore_mem>> -> memref<1x!tpu.dma_semaphore, #tpu.memory_space<semaphore_mem>>
    %5 = tpu.memref_squeeze %4 : memref<1x!tpu.dma_semaphore, #tpu.memory_space<semaphore_mem>> -> memref<!tpu.dma_semaphore, #tpu.memory_space<semaphore_mem>>
    tpu.wait_dma2 semaphore(%5 : memref<!tpu.dma_semaphore, #tpu.memory_space<semaphore_mem>>) src(%2 : memref<2x128xf32, #tpu.memory_space<any>>) dst(%3 : memref<2x128xf32, #tpu.memory_space<vmem>>)
    %c1_i32_6 = arith.constant 1 : i32
    %c0_i32_7 = arith.constant 0 : i32
    %c0_i32_8 = arith.constant 0 : i32
    %6 = tpu.memref_slice %arg2[%c0_i32_7, %c0_i32_8] : memref<1024x128xf32, #tpu.memory_space<any>> -> memref<2x128xf32, #tpu.memory_space<any>>
    %c0_i32_9 = arith.constant 0 : i32
    %c0_i32_10 = arith.constant 0 : i32
    %7 = tpu.memref_slice %arg3[%c0_i32_9, %c0_i32_10] : memref<16x128xf32, #tpu.memory_space<vmem>> -> memref<2x128xf32, #tpu.memory_space<vmem>>
    %8 = tpu.memref_slice %arg4[%c1_i32_6] : memref<8x!tpu.dma_semaphore, #tpu.memory_space<semaphore_mem>> -> memref<1x!tpu.dma_semaphore, #tpu.memory_space<semaphore_mem>>
    %9 = tpu.memref_squeeze %8 : memref<1x!tpu.dma_semaphore, #tpu.memory_space<semaphore_mem>> -> memref<!tpu.dma_semaphore, #tpu.memory_space<semaphore_mem>>
    tpu.wait_dma2 semaphore(%9 : memref<!tpu.dma_semaphore, #tpu.memory_space<semaphore_mem>>) src(%6 : memref<2x128xf32, #tpu.memory_space<any>>) dst(%7 : memref<2x128xf32, #tpu.memory_space<vmem>>)
    %c2_i32_11 = arith.constant 2 : i32
    %c0_i32_12 = arith.constant 0 : i32
    %c0_i32_13 = arith.constant 0 : i32
    %10 = tpu.memref_slice %arg2[%c0_i32_12, %c0_i32_13] : memref<1024x128xf32, #tpu.memory_space<any>> -> memref<2x128xf32, #tpu.memory_space<any>>
    %c0_i32_14 = arith.constant 0 : i32
    %c0_i32_15 = arith.constant 0 : i32
    %11 = tpu.memref_slice %arg3[%c0_i32_14, %c0_i32_15] : memref<16x128xf32, #tpu.memory_space<vmem>> -> memref<2x128xf32, #tpu.memory_space<vmem>>
    %12 = tpu.memref_slice %arg4[%c2_i32_11] : memref<8x!tpu.dma_semaphore, #tpu.memory_space<semaphore_mem>> -> memref<1x!tpu.dma_semaphore, #tpu.memory_space<semaphore_mem>>
    %13 = tpu.memref_squeeze %12 : memref<1x!tpu.dma_semaphore, #tpu.memory_space<semaphore_mem>> -> memref<!tpu.dma_semaphore, #tpu.memory_space<semaphore_mem>>
    tpu.wait_dma2 semaphore(%13 : memref<!tpu.dma_semaphore, #tpu.memory_space<semaphore_mem>>) src(%10 : memref<2x128xf32, #tpu.memory_space<any>>) dst(%11 : memref<2x128xf32, #tpu.memory_space<vmem>>)
    %c3_i32 = arith.constant 3 : i32
    %c0_i32_16 = arith.constant 0 : i32
    %c0_i32_17 = arith.constant 0 : i32
    %14 = tpu.memref_slice %arg2[%c0_i32_16, %c0_i32_17] : memref<1024x128xf32, #tpu.memory_space<any>> -> memref<2x128xf32, #tpu.memory_space<any>>
    %c0_i32_18 = arith.constant 0 : i32
    %c0_i32_19 = arith.constant 0 : i32
    %15 = tpu.memref_slice %arg3[%c0_i32_18, %c0_i32_19] : memref<16x128xf32, #tpu.memory_space<vmem>> -> memref<2x128xf32, #tpu.memory_space<vmem>>
    %16 = tpu.memref_slice %arg4[%c3_i32] : memref<8x!tpu.dma_semaphore, #tpu.memory_space<semaphore_mem>> -> memref<1x!tpu.dma_semaphore, #tpu.memory_space<semaphore_mem>>
    %17 = tpu.memref_squeeze %16 : memref<1x!tpu.dma_semaphore, #tpu.memory_space<semaphore_mem>> -> memref<!tpu.dma_semaphore, #tpu.memory_space<semaphore_mem>>
    tpu.wait_dma2 semaphore(%17 : memref<!tpu.dma_semaphore, #tpu.memory_space<semaphore_mem>>) src(%14 : memref<2x128xf32, #tpu.memory_space<any>>) dst(%15 : memref<2x128xf32, #tpu.memory_space<vmem>>)
    %c4_i32 = arith.constant 4 : i32
    %c0_i32_20 = arith.constant 0 : i32
    %c0_i32_21 = arith.constant 0 : i32
    %18 = tpu.memref_slice %arg2[%c0_i32_20, %c0_i32_21] : memref<1024x128xf32, #tpu.memory_space<any>> -> memref<2x128xf32, #tpu.memory_space<any>>
    %c0_i32_22 = arith.constant 0 : i32
    %c0_i32_23 = arith.constant 0 : i32
    %19 = tpu.memref_slice %arg3[%c0_i32_22, %c0_i32_23] : memref<16x128xf32, #tpu.memory_space<vmem>> -> memref<2x128xf32, #tpu.memory_space<vmem>>
    %20 = tpu.memref_slice %arg4[%c4_i32] : memref<8x!tpu.dma_semaphore, #tpu.memory_space<semaphore_mem>> -> memref<1x!tpu.dma_semaphore, #tpu.memory_space<semaphore_mem>>
    %21 = tpu.memref_squeeze %20 : memref<1x!tpu.dma_semaphore, #tpu.memory_space<semaphore_mem>> -> memref<!tpu.dma_semaphore, #tpu.memory_space<semaphore_mem>>
    tpu.wait_dma2 semaphore(%21 : memref<!tpu.dma_semaphore, #tpu.memory_space<semaphore_mem>>) src(%18 : memref<2x128xf32, #tpu.memory_space<any>>) dst(%19 : memref<2x128xf32, #tpu.memory_space<vmem>>)
    %c5_i32 = arith.constant 5 : i32
    %c0_i32_24 = arith.constant 0 : i32
    %c0_i32_25 = arith.constant 0 : i32
    %22 = tpu.memref_slice %arg2[%c0_i32_24, %c0_i32_25] : memref<1024x128xf32, #tpu.memory_space<any>> -> memref<2x128xf32, #tpu.memory_space<any>>
    %c0_i32_26 = arith.constant 0 : i32
    %c0_i32_27 = arith.constant 0 : i32
    %23 = tpu.memref_slice %arg3[%c0_i32_26, %c0_i32_27] : memref<16x128xf32, #tpu.memory_space<vmem>> -> memref<2x128xf32, #tpu.memory_space<vmem>>
    %24 = tpu.memref_slice %arg4[%c5_i32] : memref<8x!tpu.dma_semaphore, #tpu.memory_space<semaphore_mem>> -> memref<1x!tpu.dma_semaphore, #tpu.memory_space<semaphore_mem>>
    %25 = tpu.memref_squeeze %24 : memref<1x!tpu.dma_semaphore, #tpu.memory_space<semaphore_mem>> -> memref<!tpu.dma_semaphore, #tpu.memory_space<semaphore_mem>>
    tpu.wait_dma2 semaphore(%25 : memref<!tpu.dma_semaphore, #tpu.memory_space<semaphore_mem>>) src(%22 : memref<2x128xf32, #tpu.memory_space<any>>) dst(%23 : memref<2x128xf32, #tpu.memory_space<vmem>>)
    %c6_i32 = arith.constant 6 : i32
    %c0_i32_28 = arith.constant 0 : i32
    %c0_i32_29 = arith.constant 0 : i32
    %26 = tpu.memref_slice %arg2[%c0_i32_28, %c0_i32_29] : memref<1024x128xf32, #tpu.memory_space<any>> -> memref<2x128xf32, #tpu.memory_space<any>>
    %c0_i32_30 = arith.constant 0 : i32
    %c0_i32_31 = arith.constant 0 : i32
    %27 = tpu.memref_slice %arg3[%c0_i32_30, %c0_i32_31] : memref<16x128xf32, #tpu.memory_space<vmem>> -> memref<2x128xf32, #tpu.memory_space<vmem>>
    %28 = tpu.memref_slice %arg4[%c6_i32] : memref<8x!tpu.dma_semaphore, #tpu.memory_space<semaphore_mem>> -> memref<1x!tpu.dma_semaphore, #tpu.memory_space<semaphore_mem>>
    %29 = tpu.memref_squeeze %28 : memref<1x!tpu.dma_semaphore, #tpu.memory_space<semaphore_mem>> -> memref<!tpu.dma_semaphore, #tpu.memory_space<semaphore_mem>>
    tpu.wait_dma2 semaphore(%29 : memref<!tpu.dma_semaphore, #tpu.memory_space<semaphore_mem>>) src(%26 : memref<2x128xf32, #tpu.memory_space<any>>) dst(%27 : memref<2x128xf32, #tpu.memory_space<vmem>>)
    %c7_i32 = arith.constant 7 : i32
    %c0_i32_32 = arith.constant 0 : i32
    %c0_i32_33 = arith.constant 0 : i32
    %30 = tpu.memref_slice %arg2[%c0_i32_32, %c0_i32_33] : memref<1024x128xf32, #tpu.memory_space<any>> -> memref<2x128xf32, #tpu.memory_space<any>>
    %c0_i32_34 = arith.constant 0 : i32
    %c0_i32_35 = arith.constant 0 : i32
    %31 = tpu.memref_slice %arg3[%c0_i32_34, %c0_i32_35] : memref<16x128xf32, #tpu.memory_space<vmem>> -> memref<2x128xf32, #tpu.memory_space<vmem>>
    %32 = tpu.memref_slice %arg4[%c7_i32] : memref<8x!tpu.dma_semaphore, #tpu.memory_space<semaphore_mem>> -> memref<1x!tpu.dma_semaphore, #tpu.memory_space<semaphore_mem>>
    %33 = tpu.memref_squeeze %32 : memref<1x!tpu.dma_semaphore, #tpu.memory_space<semaphore_mem>> -> memref<!tpu.dma_semaphore, #tpu.memory_space<semaphore_mem>>
    tpu.wait_dma2 semaphore(%33 : memref<!tpu.dma_semaphore, #tpu.memory_space<semaphore_mem>>) src(%30 : memref<2x128xf32, #tpu.memory_space<any>>) dst(%31 : memref<2x128xf32, #tpu.memory_space<vmem>>)
    %c0 = arith.constant 0 : index
    %c0_36 = arith.constant 0 : index
    %34 = vector.load %arg3[%c0, %c0_36] : memref<16x128xf32, #tpu.memory_space<vmem>>, vector<16x128xf32>
    %cst = arith.constant 11.3137083 : f32
    %35 = vector.broadcast %cst : f32 to vector<16x128xf32>
    %36 = arith.mulf %34, %35 : vector<16x128xf32>
    %c0_37 = arith.constant 0 : index
    %c0_38 = arith.constant 0 : index
    %37 = vector.load %arg3[%c0_37, %c0_38] : memref<16x128xf32, #tpu.memory_space<vmem>>, vector<16x128xf32>
    tpu.vector_store %arg3[%c0_37, %c0_38], %36 {strides = array<i32>} : memref<16x128xf32, #tpu.memory_space<vmem>>, vector<16x128xf32>,
    return
  }
  func.func @transform_1(%arg0: i32, %arg1: memref<16xi32, #tpu.memory_space<smem>>) -> (i32, i32) {
    %c0_i32 = arith.constant 0 : i32
    %c0_i32_0 = arith.constant 0 : i32
    return %arg0, %c0_i32 : i32, i32
  }
}

</mosaic_0001>

<llo_original>
// kernel: tpu_custom_call.1
$region0: #{tpu_custom_call.1}
  #allocation0 [shape = 'u32[]', space=smem, size = 0x4, offset = 0x4, fixed_abs, tag = 'smem constant byte address 0x4 - core index']
  #allocation1 [shape = 'u32[72,128]{1,0:T(1,128)}', space=vmem, size = 0x9000, scoped, tag = 'internal scratch']
  #allocation2 [shape = 's32[8]{0}', space=sflag, size = 0x20, scoped, tag = 'scratch operand']
  #allocation3 [shape = 's32[1]{0}', space=sflag, size = 0x4, scoped, tag = 'scoped memory for tpu_custom_call.1']
  #allocation4 [shape = 'u8[512]{0}', space=smem, size = 0x200, scoped, tag = 'prefetched SMEM operand 0']
  #allocation7 [shape = 's32[]', space=sflag, size = 0x4, offset = 0, fixed_abs, tag = 'sflag constant byte address 0x0 - dummy sync flag']
  #allocation8 [shape = 's32[]', space=sflag, size = 0x4, offset = 0, fixed_abs, tag = 'sflag constant byte address 0x0 - dummy sync flag']
  #allocation9 [shape = 'u32[]', space=smem, size = 0x4, offset = 0x44, fixed_abs, tag = 'smem constant byte address 0x44 - assertion arg 0']
  #allocation10 [shape = 'u32[]', space=smem, size = 0x4, offset = 0x48, fixed_abs, tag = 'smem constant byte address 0x48 - assertion arg 1']
  #allocation11 [shape = 's32[]', space=sflag, size = 0x4, offset = 0, fixed_abs, tag = 'sflag constant byte address 0x0 - dummy sync flag']
  #allocation12 [shape = 's32[]', space=sflag, size = 0x4, offset = 0, fixed_abs, tag = 'sflag constant byte address 0x0 - dummy sync flag']
  #allocation13 [shape = 's32[]', space=sflag, size = 0x4, offset = 0, fixed_abs, tag = 'sflag constant byte address 0x0 - dummy sync flag']
  #allocation14 [shape = 's32[]', space=sflag, size = 0x4, offset = 0, fixed_abs, tag = 'sflag constant byte address 0x0 - dummy sync flag']
  #allocation15 [shape = 's32[]', space=sflag, size = 0x4, offset = 0, fixed_abs, tag = 'sflag constant byte address 0x0 - dummy sync flag']
  #allocation16 [shape = 's32[]', space=sflag, size = 0x4, offset = 0, fixed_abs, tag = 'sflag constant byte address 0x0 - dummy sync flag']
  #allocation17 [shape = 's32[]', space=sflag, size = 0x4, offset = 0, fixed_abs, tag = 'sflag constant byte address 0x0 - dummy sync flag']
  #allocation18 [shape = 's32[]', space=sflag, size = 0x4, offset = 0, fixed_abs, tag = 'sflag constant byte address 0x0 - dummy sync flag']
  #allocation19 [shape = 's32[]', space=sflag, size = 0x4, offset = 0, fixed_abs, tag = 'sflag constant byte address 0x0 - dummy sync flag']
  #allocation20 [shape = 's32[]', space=sflag, size = 0x4, offset = 0, fixed_abs, tag = 'sflag constant byte address 0x0 - dummy sync flag']
  #allocation21 [shape = 's32[]', space=sflag, size = 0x4, offset = 0, fixed_abs, tag = 'sflag constant byte address 0x0 - dummy sync flag']
  #allocation22 [shape = 's32[]', space=sflag, size = 0x4, offset = 0, fixed_abs, tag = 'sflag constant byte address 0x0 - dummy sync flag']
  #allocation23 [shape = 's32[]', space=sflag, size = 0x4, offset = 0, fixed_abs, tag = 'sflag constant byte address 0x0 - dummy sync flag']
  #allocation24 [shape = 's32[]', space=sflag, size = 0x4, offset = 0, fixed_abs, tag = 'sflag constant byte address 0x0 - dummy sync flag']
  %s0 = inlined_call_operand.hbm [shape: s32[16], index: 0, kind: input, shape index: {}]
  %s1 = inlined_call_operand.hbm [shape: f32[1024,128], index: 1, kind: input, shape index: {}]
  %s2 = inlined_call_operand.hbm [shape: f32[16,128], index: 2, kind: output, shape index: {}]
  %s3 = sld [smem:[#allocation0]]
  $region49: #{tpu_custom_call.1} parent=0
    _
  %s5 = ssub.s32 1, %s3
  %s6 = scalar_select 0, %s5, %s3
  %s8 = sshll.u32 %s0, 4
  %s9 = int_to_ptr.hbm [resolvable:$true] %s8
  %11 = dma.hbm_to_smem %s9, 16, [#allocation4], [#allocation3]
  %13 = dma.done [#allocation3], 16
  %14 = sfence
  $region1: #{tpu_custom_call.1} parent=0
    #allocation5 [shape = 'u8[8192]{0}', space=vmem, size = 0x2000, scoped, tag = 'output window, operand 0, single buffered']
    #allocation6 [shape = 's32[1]{0}', space=sflag, size = 0x4, scoped, tag = 'scoped memory for tpu_custom_call.1']
    %15 = vsyncpa [#allocation6], 0
    %s16 = smul.u32 0, 16
    loop: start=0, step=1, limit=2
    $region2: #{tpu_custom_call.1} parent=1 // loop_pre_header
      _
    $region3: #{tpu_custom_call.1} parent=1 // loop_header
      %s18 = sphi 0, %s22
      %p19 = scmp.ge.s32.totalorder %s18, 2
    $region4: #{tpu_custom_call.1} parent=1 // loop_header_branch
      %21 = sbr.rel (%p19) target = $region8
    $region5: #{tpu_custom_call.1} parent=1 // loop_body
      %s23 = smul.u32 %s18, 8
      %s24 = sadd.s32 %s16, %s23
      %s25 = sld [smem:[#allocation4 + %s24]]
      %s26 = scalar_lea.hbm %s1, %s25
      %s27 = scalar_lea.vmem [#allocation5], %s23
      // Predicated region
      $region9: #{tpu_custom_call.1} parent=5 // pred_check
        _
      $region10: #{tpu_custom_call.1} parent=5 // pred_check_branch
        %29 = sbr.rel target = $region12
      $region11: #{tpu_custom_call.1} parent=5 // pred_region
        %30 = sst [smem:[#allocation9]] [#allocation8]
        %31 = sst [smem:[#allocation10]] [#allocation7]
      $region12: #{tpu_custom_call.1} parent=5 // pred_fallthru
        _
      %33 = shalt.err (0)
      %s35 = sshll.u32 %s26, 4
      %s36 = int_to_ptr.hbm [resolvable:$true] %s35
      %s37 = sshll.u32 %s27, 4
      %s38 = int_to_ptr.vmem [resolvable:$true] %s37
      %40 = dma.hbm_to_vmem [thread:$0]  %s36, 16, %s38, [#allocation2]
      %s41 = sadd.s32 %s23, 1
      %s42 = sadd.s32 %s16, %s41
      %s43 = sld [smem:[#allocation4 + %s42]]
      %s44 = scalar_lea.hbm %s1, %s43
      %s45 = scalar_lea.vmem [#allocation5], %s41
      %s46 = scalar_lea.sflag [#allocation2], 1
      // Predicated region
      $region13: #{tpu_custom_call.1} parent=5 // pred_check
        _
      $region14: #{tpu_custom_call.1} parent=5 // pred_check_branch
        %48 = sbr.rel target = $region16
      $region15: #{tpu_custom_call.1} parent=5 // pred_region
        %49 = sst [smem:[#allocation9]] [#allocation12]
        %50 = sst [smem:[#allocation10]] [#allocation11]
      $region16: #{tpu_custom_call.1} parent=5 // pred_fallthru
        _
      %52 = shalt.err (0)
      %s54 = sshll.u32 %s44, 4
      %s55 = int_to_ptr.hbm [resolvable:$true] %s54
      %s56 = sshll.u32 %s45, 4
      %s57 = int_to_ptr.vmem [resolvable:$true] %s56
      %59 = dma.hbm_to_vmem [thread:$0]  %s55, 16, %s57, %s46
      %s60 = sadd.s32 %s23, 2
      %s61 = sadd.s32 %s16, %s60
      %s62 = sld [smem:[#allocation4 + %s61]]
      %s63 = scalar_lea.hbm %s1, %s62
      %s64 = scalar_lea.vmem [#allocation5], %s60
      %s65 = scalar_lea.sflag [#allocation2], 2
      // Predicated region
      $region17: #{tpu_custom_call.1} parent=5 // pred_check
        _
      $region18: #{tpu_custom_call.1} parent=5 // pred_check_branch
        %67 = sbr.rel target = $region20
      $region19: #{tpu_custom_call.1} parent=5 // pred_region
        %68 = sst [smem:[#allocation9]] [#allocation14]
        %69 = sst [smem:[#allocation10]] [#allocation13]
      $region20: #{tpu_custom_call.1} parent=5 // pred_fallthru
        _
      %71 = shalt.err (0)
      %s73 = sshll.u32 %s63, 4
      %s74 = int_to_ptr.hbm [resolvable:$true] %s73
      %s75 = sshll.u32 %s64, 4
      %s76 = int_to_ptr.vmem [resolvable:$true] %s75
      %78 = dma.hbm_to_vmem [thread:$0]  %s74, 16, %s76, %s65
      %s79 = sadd.s32 %s23, 3
      %s80 = sadd.s32 %s16, %s79
      %s81 = sld [smem:[#allocation4 + %s80]]
      %s82 = scalar_lea.hbm %s1, %s81
      %s83 = scalar_lea.vmem [#allocation5], %s79
      %s84 = scalar_lea.sflag [#allocation2], 3
      // Predicated region
      $region21: #{tpu_custom_call.1} parent=5 // pred_check
        _
      $region22: #{tpu_custom_call.1} parent=5 // pred_check_branch
        %86 = sbr.rel target = $region24
      $region23: #{tpu_custom_call.1} parent=5 // pred_region
        %87 = sst [smem:[#allocation9]] [#allocation16]
        %88 = sst [smem:[#allocation10]] [#allocation15]
      $region24: #{tpu_custom_call.1} parent=5 // pred_fallthru
        _
      %90 = shalt.err (0)
      %s92 = sshll.u32 %s82, 4
      %s93 = int_to_ptr.hbm [resolvable:$true] %s92
      %s94 = sshll.u32 %s83, 4
      %s95 = int_to_ptr.vmem [resolvable:$true] %s94
      %97 = dma.hbm_to_vmem [thread:$0]  %s93, 16, %s95, %s84
      %s98 = sadd.s32 %s23, 4
      %s99 = sadd.s32 %s16, %s98
      %s100 = sld [smem:[#allocation4 + %s99]]
      %s101 = scalar_lea.hbm %s1, %s100
      %s102 = scalar_lea.vmem [#allocation5], %s98
      %s103 = scalar_lea.sflag [#allocation2], 4
      // Predicated region
      $region25: #{tpu_custom_call.1} parent=5 // pred_check
        _
      $region26: #{tpu_custom_call.1} parent=5 // pred_check_branch
        %105 = sbr.rel target = $region28
      $region27: #{tpu_custom_call.1} parent=5 // pred_region
        %106 = sst [smem:[#allocation9]] [#allocation18]
        %107 = sst [smem:[#allocation10]] [#allocation17]
      $region28: #{tpu_custom_call.1} parent=5 // pred_fallthru
        _
      %109 = shalt.err (0)
      %s111 = sshll.u32 %s101, 4
      %s112 = int_to_ptr.hbm [resolvable:$true] %s111
      %s113 = sshll.u32 %s102, 4
      %s114 = int_to_ptr.vmem [resolvable:$true] %s113
      %116 = dma.hbm_to_vmem [thread:$0]  %s112, 16, %s114, %s103
      %s117 = sadd.s32 %s23, 5
      %s118 = sadd.s32 %s16, %s117
      %s119 = sld [smem:[#allocation4 + %s118]]
      %s120 = scalar_lea.hbm %s1, %s119
      %s121 = scalar_lea.vmem [#allocation5], %s117
      %s122 = scalar_lea.sflag [#allocation2], 5
      // Predicated region
      $region29: #{tpu_custom_call.1} parent=5 // pred_check
        _
      $region30: #{tpu_custom_call.1} parent=5 // pred_check_branch
        %124 = sbr.rel target = $region32
      $region31: #{tpu_custom_call.1} parent=5 // pred_region
        %125 = sst [smem:[#allocation9]] [#allocation20]
        %126 = sst [smem:[#allocation10]] [#allocation19]
      $region32: #{tpu_custom_call.1} parent=5 // pred_fallthru
        _
      %128 = shalt.err (0)
      %s130 = sshll.u32 %s120, 4
      %s131 = int_to_ptr.hbm [resolvable:$true] %s130
      %s132 = sshll.u32 %s121, 4
      %s133 = int_to_ptr.vmem [resolvable:$true] %s132
      %135 = dma.hbm_to_vmem [thread:$0]  %s131, 16, %s133, %s122
      %s136 = sadd.s32 %s23, 6
      %s137 = sadd.s32 %s16, %s136
      %s138 = sld [smem:[#allocation4 + %s137]]
      %s139 = scalar_lea.hbm %s1, %s138
      %s140 = scalar_lea.vmem [#allocation5], %s136
      %s141 = scalar_lea.sflag [#allocation2], 6
      // Predicated region
      $region33: #{tpu_custom_call.1} parent=5 // pred_check
        _
      $region34: #{tpu_custom_call.1} parent=5 // pred_check_branch
        %143 = sbr.rel target = $region36
      $region35: #{tpu_custom_call.1} parent=5 // pred_region
        %144 = sst [smem:[#allocation9]] [#allocation22]
        %145 = sst [smem:[#allocation10]] [#allocation21]
      $region36: #{tpu_custom_call.1} parent=5 // pred_fallthru
        _
      %147 = shalt.err (0)
      %s149 = sshll.u32 %s139, 4
      %s150 = int_to_ptr.hbm [resolvable:$true] %s149
      %s151 = sshll.u32 %s140, 4
      %s152 = int_to_ptr.vmem [resolvable:$true] %s151
      %154 = dma.hbm_to_vmem [thread:$0]  %s150, 16, %s152, %s141
      %s155 = sadd.s32 %s23, 7
      %s156 = sadd.s32 %s16, %s155
      %s157 = sld [smem:[#allocation4 + %s156]]
      %s158 = scalar_lea.hbm %s1, %s157
      %s159 = scalar_lea.vmem [#allocation5], %s155
      %s160 = scalar_lea.sflag [#allocation2], 7
      // Predicated region
      $region37: #{tpu_custom_call.1} parent=5 // pred_check
        _
      $region38: #{tpu_custom_call.1} parent=5 // pred_check_branch
        %162 = sbr.rel target = $region40
      $region39: #{tpu_custom_call.1} parent=5 // pred_region
        %163 = sst [smem:[#allocation9]] [#allocation24]
        %164 = sst [smem:[#allocation10]] [#allocation23]
      $region40: #{tpu_custom_call.1} parent=5 // pred_fallthru
        _
      %166 = shalt.err (0)
      %s168 = sshll.u32 %s158, 4
      %s169 = int_to_ptr.hbm [resolvable:$true] %s168
      %s170 = sshll.u32 %s159, 4
      %s171 = int_to_ptr.vmem [resolvable:$true] %s170
      %173 = dma.hbm_to_vmem [thread:$0]  %s169, 16, %s171, %s160
    $region6: #{tpu_custom_call.1} parent=1 // loop_footer
      %s22 = sadd.s32 1, %s18
    $region7: #{tpu_custom_call.1} parent=1 // loop_footer_branch
      %17 = sbr.rel target = $region3
    $region8: #{tpu_custom_call.1} parent=1 // loop_exit
      _
    %s174 = smul.u32 2, 1
    %s175 = sshll.u32 %s174, 4
    %176 = dma.done [#allocation2], %s175
    %s177 = scalar_lea.sflag [#allocation2], 1
    %s178 = sshll.u32 %s174, 4
    %179 = dma.done %s177, %s178
    %s180 = scalar_lea.sflag [#allocation2], 2
    %s181 = sshll.u32 %s174, 4
    %182 = dma.done %s180, %s181
    %s183 = scalar_lea.sflag [#allocation2], 3
    %s184 = sshll.u32 %s174, 4
    %185 = dma.done %s183, %s184
    %s186 = scalar_lea.sflag [#allocation2], 4
    %s187 = sshll.u32 %s174, 4
    %188 = dma.done %s186, %s187
    %s189 = scalar_lea.sflag [#allocation2], 5
    %s190 = sshll.u32 %s174, 4
    %191 = dma.done %s189, %s190
    %s192 = scalar_lea.sflag [#allocation2], 6
    %s193 = sshll.u32 %s174, 4
    %194 = dma.done %s192, %s193
    %s195 = scalar_lea.sflag [#allocation2], 7
    %s196 = sshll.u32 %s174, 4
    %197 = dma.done %s195, %s196
    %v198 = vld [vmem:[#allocation5] sm:$0xff]
    %v199 = vld [vmem:[#allocation5 + $0x8] sm:$0xff]
    %v200 = vmul.f32 %v198, 11.313708
    %v201 = vmul.f32 %v199, 11.313708
    %202 = vst [vmem:[#allocation5] sm:$0xff] %v200
    %203 = vst [vmem:[#allocation5 + $0x8] sm:$0xff] %v201
    // Predicated region
    $region41: #{tpu_custom_call.1} parent=1 // pred_check
      _
    $region42: #{tpu_custom_call.1} parent=1 // pred_check_branch
      %205 = sbr.rel (0) target = $region44
    $region43: #{tpu_custom_call.1} parent=1 // pred_region
      %207 = vsyncadd [#allocation6], 0
      %s208 = sshll.u32 [#allocation5], 4
      %s209 = int_to_ptr.vmem [resolvable:$true] %s208
      %s210 = sshll.u32 %s2, 4
      %s211 = int_to_ptr.hbm [resolvable:$true] %s210
      %216 = dma.vmem_to_hbm [thread:$0]  %s209, 256, %s211, [#allocation6], 128, 128, 8
    $region44: #{tpu_custom_call.1} parent=1 // pred_fallthru
      _
    // Predicated region
    $region45: #{tpu_custom_call.1} parent=1 // pred_check
      _
    $region46: #{tpu_custom_call.1} parent=1 // pred_check_branch
      %218 = sbr.rel (0) target = $region48
    $region47: #{tpu_custom_call.1} parent=1 // pred_region
      %220 = dma.done [#allocation6], 256
    $region48: #{tpu_custom_call.1} parent=1 // pred_fallthru
      _
    %221 = vsyncpa [#allocation6], 1
  %222 = vsyncmov [#allocation2]
  %s223 = vpop.sfrf %222
  %p224 = scmp.eq.s32.totalorder %s223, 0
  %p225 = pneg %p224
  %227 = shalt.err (%p225)
  %s228 = scalar_lea.sflag [#allocation2], 1
  %229 = vsyncmov %s228
  %s230 = vpop.sfrf %229
  %p231 = scmp.eq.s32.totalorder %s230, 0
  %p232 = pneg %p231
  %234 = shalt.err (%p232)
  %s235 = scalar_lea.sflag [#allocation2], 2
  %236 = vsyncmov %s235
  %s237 = vpop.sfrf %236
  %p238 = scmp.eq.s32.totalorder %s237, 0
  %p239 = pneg %p238
  %241 = shalt.err (%p239)
  %s242 = scalar_lea.sflag [#allocation2], 3
  %243 = vsyncmov %s242
  %s244 = vpop.sfrf %243
  %p245 = scmp.eq.s32.totalorder %s244, 0
  %p246 = pneg %p245
  %248 = shalt.err (%p246)
  %s249 = scalar_lea.sflag [#allocation2], 4
  %250 = vsyncmov %s249
  %s251 = vpop.sfrf %250
  %p252 = scmp.eq.s32.totalorder %s251, 0
  %p253 = pneg %p252
  %255 = shalt.err (%p253)
  %s256 = scalar_lea.sflag [#allocation2], 5
  %257 = vsyncmov %s256
  %s258 = vpop.sfrf %257
  %p259 = scmp.eq.s32.totalorder %s258, 0
  %p260 = pneg %p259
  %262 = shalt.err (%p260)
  %s263 = scalar_lea.sflag [#allocation2], 6
  %264 = vsyncmov %s263
  %s265 = vpop.sfrf %264
  %p266 = scmp.eq.s32.totalorder %s265, 0
  %p267 = pneg %p266
  %269 = shalt.err (%p267)
  %s270 = scalar_lea.sflag [#allocation2], 7
  %271 = vsyncmov %s270
  %s272 = vpop.sfrf %271
  %p273 = scmp.eq.s32.totalorder %s272, 0
  %p274 = pneg %p273
  %276 = shalt.err (%p274)

</llo_original>
